<compile_context>
chip_gen: v7x
topology: tpu7x:2x2x1
jax: 0.10.0
libtpu: 0.0.40
codegen_flags: <defaults>
</compile_context>

<pallas_src>
import functools

import jax
import jax.numpy as jnp
from jax.experimental import pallas as pl
from jax.experimental.pallas import tpu as pltpu

FOCUS_PARAM = 2        # integer exponent -> explicit square inside the kernel
BALANCE_PARAM = 0.25


def _focal_loss_kernel(logits_ref, targets_ref, out_ref, acc_ref, *, valid_n):
    i = pl.program_id(0)

    @pl.when(i == 0)
    def _():
        acc_ref[0] = jnp.float32(0.0)

    logits = logits_ref[...].astype(jnp.float32)       # (TILE_N, C)
    tgt = targets_ref[...]                             # (TILE_N, 1) int32
    tile_n = logits.shape[0]

    # Mask rows that fall past the true batch size (remainder-tile padding).
    row_ids = i * tile_n + jax.lax.broadcasted_iota(jnp.int32, (tile_n, 1), 0)
    valid = row_ids < valid_n

    # Numerically stable log-softmax; reuse the shifted logits for the target
    # gather -- the row_max terms cancel in ce = lse - tgt_logit.
    row_max = jnp.max(logits, axis=-1, keepdims=True)                    # (T, 1)
    shifted = logits - row_max                                           # (T, C)
    sum_exp = jnp.sum(jnp.exp(shifted), axis=-1, keepdims=True)          # (T, 1)

    class_ids = jax.lax.broadcasted_iota(jnp.int32, logits.shape, 1)
    tgt_shifted = jnp.sum(jnp.where(class_ids == tgt, shifted, 0.0),
                          axis=-1, keepdims=True)                        # (T, 1)

    ce = jnp.log(sum_exp) - tgt_shifted                                  # (T, 1)
    acc_ref[0] += jnp.sum(jnp.where(valid, ce, 0.0))

    @pl.when(i == pl.num_programs(0) - 1)
    def _():
        mean_ce = acc_ref[0] / jnp.float32(valid_n)
        log_pt = -mean_ce
        pt = jnp.exp(log_pt)
        one_minus_pt = 1.0 - pt
        focal = -(one_minus_pt * one_minus_pt) * log_pt    # (1-pt)**2, pow-free
        out_ref[0, 0] = jnp.float32(BALANCE_PARAM) * focal


def _choose_tile_n(n, c, itemsize):
    # Keep each in-flight logits tile <= ~4 MiB so double-buffered inputs stay
    # comfortably under scoped-VMEM defaults on every TPU generation
    # (16 MiB v5e / 32 MiB v6e / 32-of-64 MiB v7x).
    budget_bytes = 4 * 1024 * 1024
    t = budget_bytes // max(1, c * itemsize)
    t = max(8, min(1024, (t // 8) * 8))          # sublane-aligned, capped
    n_pad = ((n + 7) // 8) * 8
    return min(t, n_pad)


def focal_loss(logits, targets):
    """logits: (N, C) float32/bfloat16, targets: (N,) int -> scalar float32."""
    n, c = logits.shape
    targets2d = targets.astype(jnp.int32).reshape(n, 1)

    tile_n = _choose_tile_n(n, c, jnp.dtype(logits.dtype).itemsize)
    num_tiles = pl.cdiv(n, tile_n)

    kernel = functools.partial(_focal_loss_kernel, valid_n=n)
    out = pl.pallas_call(
        kernel,
        out_shape=jax.ShapeDtypeStruct((1, 1), jnp.float32),
        grid=(num_tiles,),
        in_specs=[
            pl.BlockSpec((tile_n, c), lambda i: (i, 0)),
            pl.BlockSpec((tile_n, 1), lambda i: (i, 0)),
        ],
        out_specs=pl.BlockSpec(memory_space=pltpu.SMEM),
        scratch_shapes=[pltpu.SMEM((1,), jnp.float32)],
        compiler_params=pltpu.CompilerParams(
            dimension_semantics=("arbitrary",)),
        # TODO(synk): on v7x a 2-way "parallel" batch split across both
        # TensorCores (partial sums combined in the wrapper) would use the
        # second HBM path; kept single-core here for simplicity.
    )(logits, targets2d)
    return out[0, 0]


def focal_loss_ref(logits, targets):
    """Pure-JAX reference matching F.cross_entropy + focal transform."""
    logp = jax.nn.log_softmax(logits.astype(jnp.float32), axis=-1)
    nll = -jnp.take_along_axis(logp, targets[:, None].astype(jnp.int32), axis=-1)
    mean_ce = jnp.mean(nll)
    log_pt = -mean_ce
    pt = jnp.exp(log_pt)
    return BALANCE_PARAM * (-((1.0 - pt) ** 2) * log_pt)


if __name__ == "__main__":
    key = jax.random.PRNGKey(0)

    # Case 1: the small canonical shape (batch=8, classes=32).
    k1, k2, k3, k4 = jax.random.split(key, 4)
    N, C = 8, 32
    logits = jax.random.normal(k1, (N, C), dtype=jnp.float32)
    targets = jax.random.randint(k2, (N,), 0, C, dtype=jnp.int32)

    loss = focal_loss(logits, targets)
    jax.block_until_ready(loss)
    ref = focal_loss_ref(logits, targets)
    assert jnp.allclose(loss, ref, atol=1e-5, rtol=1e-5), (loss, ref)

    # Case 2: non-multiple-of-8 batch to exercise the remainder-row masking.
    N2, C2 = 20, 32
    logits2 = jax.random.normal(k3, (N2, C2), dtype=jnp.float32)
    targets2 = jax.random.randint(k4, (N2,), 0, C2, dtype=jnp.int32)

    loss2 = focal_loss(logits2, targets2)
    jax.block_until_ready(loss2)
    ref2 = focal_loss_ref(logits2, targets2)
    assert jnp.allclose(loss2, ref2, atol=1e-5, rtol=1e-5), (loss2, ref2)

    print("KERNEL_OK")
</pallas_src>

<mosaic_0001>
module attributes {stable_mosaic.version = 11 : i64} {
  func.func @_focal_loss_kernel(%arg0: i32, %arg1: memref<8x32xf32, #tpu.memory_space<vmem>>, %arg2: memref<8x1xi32, #tpu.memory_space<vmem>>, %arg3: memref<1x1xf32, #tpu.memory_space<smem>>, %arg4: memref<1xf32, #tpu.memory_space<smem>>) attributes {dimension_semantics = [#tpu.dimension_semantics<arbitrary>], iteration_bounds = array<i64: 1>, scalar_prefetch = 0 : i64, scratch_operands = 1 : i64, tpu.core_type = #tpu.core_type<tc>, window_params = [{transform_indices = @transform_0, window_bounds = array<i64: 8, 32>}, {transform_indices = @transform_1, window_bounds = array<i64: 8, 1>}, {transform_indices = @transform_2, window_bounds = array<i64: 1, 1>}]} {
    %c0_i32 = arith.constant 0 : i32
    %0 = arith.cmpi eq, %arg0, %c0_i32 : i32
    %1 = arith.extui %0 : i1 to i32
    %c0_i32_0 = arith.constant 0 : i32
    %2 = arith.cmpi ne, %1, %c0_i32_0 : i32
    scf.if %2 {
      %cst_14 = arith.constant 0.000000e+00 : f32
      %c0_15 = arith.constant 0 : index
      %39 = memref.load %arg4[%c0_15] : memref<1xf32, #tpu.memory_space<smem>>
      memref.store %cst_14, %arg4[%c0_15] : memref<1xf32, #tpu.memory_space<smem>>
    } else {
    }
    %c0 = arith.constant 0 : index
    %c0_1 = arith.constant 0 : index
    %3 = vector.load %arg1[%c0, %c0_1] : memref<8x32xf32, #tpu.memory_space<vmem>>, vector<8x32xf32>
    %c0_2 = arith.constant 0 : index
    %c0_3 = arith.constant 0 : index
    %4 = vector.load %arg2[%c0_2, %c0_3] : memref<8x1xi32, #tpu.memory_space<vmem>>, vector<8x1xi32>
    %c8_i32 = arith.constant 8 : i32
    %5 = arith.muli %arg0, %c8_i32 : i32
    %6 = tpu.iota {dimensions = array<i32: 0>} : vector<8x1xi32>
    %7 = vector.broadcast %5 : i32 to vector<8x1xi32>
    %8 = arith.addi %7, %6 : vector<8x1xi32>
    %c8_i32_4 = arith.constant 8 : i32
    %9 = vector.broadcast %c8_i32_4 : i32 to vector<8x1xi32>
    %10 = arith.cmpi slt, %8, %9 : vector<8x1xi32>
    %cst = arith.constant dense<0xFF800000> : vector<8xf32>
    %11 = vector.multi_reduction <maximumf>, %3, %cst [1] : vector<8x32xf32> to vector<8xf32>
    %12 = vector.shape_cast %11 : vector<8xf32> to vector<8x1xf32>
    %13 = vector.broadcast %12 : vector<8x1xf32> to vector<8x32xf32>
    %14 = arith.subf %3, %13 : vector<8x32xf32>
    %15 = math.exp %14 : vector<8x32xf32>
    %cst_5 = arith.constant dense<0.000000e+00> : vector<8xf32>
    %16 = vector.multi_reduction <add>, %15, %cst_5 [1] : vector<8x32xf32> to vector<8xf32>
    %17 = vector.shape_cast %16 : vector<8xf32> to vector<8x1xf32>
    %18 = tpu.iota {dimensions = array<i32: 1>} : vector<8x32xi32>
    %19 = vector.broadcast %4 : vector<8x1xi32> to vector<8x32xi32>
    %20 = arith.cmpi eq, %18, %19 : vector<8x32xi32>
    %cst_6 = arith.constant 0.000000e+00 : f32
    %21 = vector.broadcast %cst_6 : f32 to vector<8x32xf32>
    %22 = arith.select %20, %14, %21 : vector<8x32xi1>, vector<8x32xf32>
    %cst_7 = arith.constant dense<0.000000e+00> : vector<8xf32>
    %23 = vector.multi_reduction <add>, %22, %cst_7 [1] : vector<8x32xf32> to vector<8xf32>
    %24 = vector.shape_cast %23 : vector<8xf32> to vector<8x1xf32>
    %25 = math.log %17 : vector<8x1xf32>
    %26 = arith.subf %25, %24 : vector<8x1xf32>
    %c0_8 = arith.constant 0 : index
    %27 = memref.load %arg4[%c0_8] : memref<1xf32, #tpu.memory_space<smem>>
    %cst_9 = arith.constant 0.000000e+00 : f32
    %28 = vector.broadcast %cst_9 : f32 to vector<8x1xf32>
    %29 = arith.select %10, %26, %28 : vector<8x1xi1>, vector<8x1xf32>
    %30 = vector.shape_cast %29 : vector<8x1xf32> to vector<1x8x1xf32>
    %cst_10 = arith.constant dense<0.000000e+00> : vector<1xf32>
    %31 = vector.multi_reduction <add>, %30, %cst_10 [1, 2] : vector<1x8x1xf32> to vector<1xf32>
    %32 = vector.shape_cast %31 : vector<1xf32> to vector<1x1x1xf32>
    %33 = vector.extract %32[0, 0, 0] : f32 from vector<1x1x1xf32>
    %34 = arith.addf %27, %33 : f32
    %c0_11 = arith.constant 0 : index
    %35 = memref.load %arg4[%c0_11] : memref<1xf32, #tpu.memory_space<smem>>
    memref.store %34, %arg4[%c0_11] : memref<1xf32, #tpu.memory_space<smem>>
    %c0_i32_12 = arith.constant 0 : i32
    %36 = arith.cmpi eq, %arg0, %c0_i32_12 : i32
    %37 = arith.extui %36 : i1 to i32
    %c0_i32_13 = arith.constant 0 : i32
    %38 = arith.cmpi ne, %37, %c0_i32_13 : i32
    scf.if %38 {
      %c0_14 = arith.constant 0 : index
      %39 = memref.load %arg4[%c0_14] : memref<1xf32, #tpu.memory_space<smem>>
      %cst_15 = arith.constant 8.000000e+00 : f32
      %40 = arith.divf %39, %cst_15 : f32
      %cst_16 = arith.constant 0.000000e+00 : f32
      %41 = arith.subf %cst_16, %40 : f32
      %42 = math.exp %41 : f32
      %cst_17 = arith.constant 1.000000e+00 : f32
      %43 = arith.subf %cst_17, %42 : f32
      %44 = arith.mulf %43, %43 : f32
      %cst_18 = arith.constant 0.000000e+00 : f32
      %45 = arith.subf %cst_18, %44 : f32
      %46 = arith.mulf %45, %41 : f32
      %cst_19 = arith.constant 2.500000e-01 : f32
      %47 = arith.mulf %cst_19, %46 : f32
      %c0_20 = arith.constant 0 : index
      %c0_21 = arith.constant 0 : index
      %48 = memref.load %arg3[%c0_20, %c0_21] : memref<1x1xf32, #tpu.memory_space<smem>>
      memref.store %47, %arg3[%c0_20, %c0_21] : memref<1x1xf32, #tpu.memory_space<smem>>
    } else {
    }
    return
  }
  func.func @transform_0(%arg0: i32) -> (i32, i32) {
    %c0_i32 = arith.constant 0 : i32
    %c0_i32_0 = arith.constant 0 : i32
    return %arg0, %c0_i32 : i32, i32
  }
  func.func @transform_1(%arg0: i32) -> (i32, i32) {
    %c0_i32 = arith.constant 0 : i32
    %c0_i32_0 = arith.constant 0 : i32
    return %arg0, %c0_i32 : i32, i32
  }
  func.func @transform_2(%arg0: i32) -> (i32, i32) {
    %c0_i32 = arith.constant 0 : i32
    %c0_i32_0 = arith.constant 0 : i32
    %c0_i32_1 = arith.constant 0 : i32
    return %c0_i32, %c0_i32_0 : i32, i32
  }
}

</mosaic_0001>

<llo_original>
// kernel: tpu_custom_call.1
$region0: #{tpu_custom_call.1}
  #allocation0 [shape = 'u32[]', space=smem, size = 0x4, offset = 0x4, fixed_abs, tag = 'smem constant byte address 0x4 - core index']
  #allocation1 [shape = 'u32[144,128]{1,0:T(1,128)}', space=vmem, size = 0x12000, scoped, tag = 'internal scratch']
  #allocation2 [shape = 'f32[1]{0:T(128)}', space=smem, size = 0x200, scoped, tag = 'scratch operand']
  %s0 = inlined_call_operand.vmem [shape: f32[8,32], index: 0, kind: input, shape index: {}]
  %s1 = inlined_call_operand.vmem [shape: s32[8,1], index: 1, kind: input, shape index: {}]
  %s2 = inlined_call_operand.hbm [shape: f32[1,1], index: 2, kind: output, shape index: {}]
  %s3 = sld [smem:[#allocation0]]
  $region26: #{tpu_custom_call.1} parent=0
    _
  %s5 = ssub.s32 1, %s3
  %s6 = scalar_select 0, %s5, %s3
  $region1: #{tpu_custom_call.1} parent=0
    #allocation3 [shape = 'u8[512]{0}', space=smem, size = 0x200, scoped, tag = 'output window, operand 0, single buffered']
    #allocation4 [shape = 's32[1]{0}', space=sflag, size = 0x4, scoped, tag = 'scoped memory for tpu_custom_call.1']
    %7 = vsyncpa [#allocation4], 0
    // Predicated region
    $region2: #{tpu_custom_call.1} parent=1 // pred_check
      _
    $region3: #{tpu_custom_call.1} parent=1 // pred_check_branch
      %9 = sbr.rel (0) target = $region5
    $region4: #{tpu_custom_call.1} parent=1 // pred_region
      _
    $region5: #{tpu_custom_call.1} parent=1 // pred_fallthru
      _
    // Predicated region
    $region6: #{tpu_custom_call.1} parent=1 // pred_check
      _
    $region7: #{tpu_custom_call.1} parent=1 // pred_check_branch
      %11 = sbr.rel (0) target = $region9
    $region8: #{tpu_custom_call.1} parent=1 // pred_region
      _
    $region9: #{tpu_custom_call.1} parent=1 // pred_fallthru
      _
    %p12 = scmp.eq.s32.totalorder 0, 0
    // Predicated region
    $region10: #{tpu_custom_call.1} parent=1 // pred_check
      %p13 = pneg %p12
    $region11: #{tpu_custom_call.1} parent=1 // pred_check_branch
      %15 = sbr.rel (%p13) target = $region13
    $region12: #{tpu_custom_call.1} parent=1 // pred_region
      %s16 = scalar_lea.smem [#allocation2], 0
      %17 = sst [smem:[%s16]] 0.0
    $region13: #{tpu_custom_call.1} parent=1 // pred_fallthru
      _
    %v18 = vld [vmem:[%s0] sm:$0xff]
    %v19 = vld [vmem:[%s1] sm:$0xff]
    %s20 = smul.u32 0, 8
    %v21 = vlaneseq
    %v22 = vshrl.u32 %v21, 7
    %v23 = vstv %s20
    %v24 = vadd.s32 %v23, %v22
    %vm25 = vcmp.lt.s32.totalorder %v24, 8
    %vm26 = vcmask 261120
    %v27 = vsel %vm26, %v18, -inf
    %28 = vmax.xlane.f32.xlu0 %v27
    %v29 = vpop.xlane.xlu0 %28
    %v30 = vsub.f32 %v18, %v29
    %v31 = vmul.f32 %v30, 1.442695
    %v32 = vpow.pop %v31
    %v33 = vsel %vm26, %v32, 0.0
    %34 = vadd.xlane.f32.xlu0 %v33
    %v35 = vpop.xlane.xlu0 %34
    %v36 = vlaneseq
    %v37 = vand.u32 %v36, 127
    %38 = vset.pattern.permute.xlu0 0
    %39 = vperm.xlu0 %38, %v19
    %v40 = vpop.permute.xlu0 %39
    %vm41 = vcmp.eq.s32.totalorder %v37, %v40
    %v42 = vsel %vm41, %v30, 0.0
    %v43 = vsel %vm26, %v42, 0.0
    %44 = vadd.xlane.f32.xlu0 %v43
    %v45 = vpop.xlane.xlu0 %44
    %v46 = vlog2.pop %v35
    %v47 = vmul.f32 %v46, 0.6931472
    %v48 = vsub.f32 %v47, %v45
    %s49 = sld [smem:[#allocation2]]
    %v50 = vsel %vm25, %v48, 0.0
    %vm51 = vcmask 7168
    %v52 = vsel %vm51, %v50, 0.0
    %53 = vadd.xlane.f32.xlu0 %v52
    %v54 = vpop.xlane.xlu0 %53
    %v55 = vrot.slane %v54, 4
    %v56 = vadd.f32 %v54, %v55
    %v57 = vrot.slane %v56, 2
    %v58 = vadd.f32 %v56, %v57
    %v59 = vrot.slane %v58, 1
    %v60 = vadd.f32 %v58, %v59
    %s61 = vtos %v60
    %s62 = sadd.f32 %s49, %s61
    %s63 = scalar_lea.smem [#allocation2], 0
    %64 = sst [smem:[%s63]] %s62
    // Predicated region
    $region14: #{tpu_custom_call.1} parent=1 // pred_check
      %p65 = pneg %p12
    $region15: #{tpu_custom_call.1} parent=1 // pred_check_branch
      %67 = sbr.rel (%p65) target = $region17
    $region16: #{tpu_custom_call.1} parent=1 // pred_region
      %s68 = sld [smem:[#allocation2]]
      %v69 = vrcp.pop 8.0
      %s70 = vtos %v69
      %s71 = smul.f32 %s68, %s70
      %s72 = ssub.f32 0.0, %s71
      %v73 = vstv %s72
      %v74 = vmul.f32 %v73, 1.442695
      %v75 = vpow.pop %v74
      %s76 = vtos %v75
      %s77 = ssub.f32 1.0, %s76
      %s78 = smul.f32 %s77, %s77
      %s79 = ssub.f32 0.0, %s78
      %s80 = smul.f32 %s79, %s72
      %s81 = smul.f32 %s80, 0.25
      %s82 = scalar_lea.smem [#allocation3], 0
      %83 = sst [smem:[%s82]] %s81
    $region17: #{tpu_custom_call.1} parent=1 // pred_fallthru
      _
    // Predicated region
    $region18: #{tpu_custom_call.1} parent=1 // pred_check
      _
    $region19: #{tpu_custom_call.1} parent=1 // pred_check_branch
      %85 = sbr.rel (0) target = $region21
    $region20: #{tpu_custom_call.1} parent=1 // pred_region
      %s87 = ssub.s32 16, 16
      %88 = vsyncadd [#allocation4], %s87
      %91 = dma.smem_to_hbm [#allocation3], 16, %s2, [#allocation4]
    $region21: #{tpu_custom_call.1} parent=1 // pred_fallthru
      _
    // Predicated region
    $region22: #{tpu_custom_call.1} parent=1 // pred_check
      _
    $region23: #{tpu_custom_call.1} parent=1 // pred_check_branch
      %93 = sbr.rel (0) target = $region25
    $region24: #{tpu_custom_call.1} parent=1 // pred_region
      %94 = dma.done [#allocation4], 16
    $region25: #{tpu_custom_call.1} parent=1 // pred_fallthru
      _
    %95 = sfence
    %96 = vsyncpa [#allocation4], 1

</llo_original>
